<compile_context>
chip_gen: v5e
topology: v5e:2x2
jax: 0.10.0
libtpu: 0.0.40
codegen_flags: <defaults>
</compile_context>

<pallas_src>
import functools

import jax
import jax.numpy as jnp
from jax.experimental import pallas as pl
from jax.experimental.pallas import tpu as pltpu

HID1, HID2 = 400, 300          # logical (PyTorch) hidden sizes
HID1P, HID2P = 512, 384        # lane-padded hidden sizes (multiples of 128)
LANE = 128
TILE_B_MAX = 256               # rows per grid step (>=2 steps for real batches)
NEG_BIG = -1e30                # softmax mask baked into padded b3 lanes


def _round_up(x, m):
    return ((x + m - 1) // m) * m


# ----------------------------- kernel -------------------------------------- #

def _critic_fused_kernel(n_atoms, x_ref, a_ref, w1_ref, b1_ref, w2o_ref,
                         w2a_ref, b2_ref, w3_ref, b3_ref, sup_ref,
                         distr_ref, q_ref):
    # ---- MLP: bf16 MXU matmuls, f32 accumulation ----
    x = x_ref[...].astype(jnp.bfloat16)
    a = a_ref[...].astype(jnp.bfloat16)

    # obs_net: Linear(obs_size, 400->512 padded) + ReLU
    obs = jnp.dot(x, w1_ref[...], preferred_element_type=jnp.float32) + b1_ref[...]
    obs = jnp.maximum(obs, 0.0).astype(jnp.bfloat16)

    # out_net layer 0: Linear(400+act, 300->384 padded) + ReLU (split matmul == concat)
    h = (jnp.dot(obs, w2o_ref[...], preferred_element_type=jnp.float32)
         + jnp.dot(a, w2a_ref[...], preferred_element_type=jnp.float32)
         + b2_ref[...])
    h = jnp.maximum(h, 0.0).astype(jnp.bfloat16)

    # out_net layer 2: Linear(300->384, n_atoms->128 padded).  Padded b3 lanes hold
    # -1e30, which bakes the softmax mask in (no iota/where below).
    d = jnp.dot(h, w3_ref[...], preferred_element_type=jnp.float32) + b3_ref[...]

    # Store only the real atoms (f32, unpadded): ~2.5x less HBM writeback than a
    # padded 128-lane f32 block and no post-kernel re-slice of distr.
    distr_ref[...] = d[:, :n_atoms].astype(distr_ref.dtype)

    # ---- fused distr_to_q: softmax over real atoms (padded lanes exp -> 0) ----
    m = jnp.max(d, axis=1, keepdims=True)
    e = jnp.exp(d - m)                                        # padded lanes -> exactly 0
    num = jnp.sum(e * sup_ref[...], axis=1, keepdims=True)    # supports 0-padded
    den = jnp.sum(e, axis=1, keepdims=True)
    q_ref[...] = (num * pl.reciprocal(den, approx=True)).astype(q_ref.dtype)


# ----------------------------- wrapper -------------------------------------- #

def d4pg_critic_forward(x, a, params):
    """Fused D4PGCritic.forward + distr_to_q.

    Returns (distr, q): distr is (B, n_atoms) — same as PyTorch forward — and
    q is (B, 1) — same as distr_to_q(forward(...)).
    """
    B, obs_size = x.shape
    act_size = a.shape[1]
    n_atoms = params["n_atoms"]
    atoms_pad = params["w3"].shape[1]

    # Tile the batch so (a) realistic batches get >= 2 grid steps (output-DMA
    # pipelining; both v7x TensorCores on the "parallel" axis), (b) tiles stay
    # tiny relative to VMEM on every generation.
    if B <= 8:
        tile_b = B                                    # block == full dim: legal
    else:
        tile_b = min(TILE_B_MAX, _round_up(pl.cdiv(B, 2), 8))
    grid = pl.cdiv(B, tile_b)
    b_pad = grid * tile_b
    if b_pad != B:
        x = jnp.pad(x, ((0, b_pad - B), (0, 0)))
        a = jnp.pad(a, ((0, b_pad - B), (0, 0)))

    def resident(shape):
        # Constant index_map -> block stays VMEM-resident across grid steps.
        return pl.BlockSpec(shape, lambda i: (0, 0))

    distr, q = pl.pallas_call(
        functools.partial(_critic_fused_kernel, n_atoms),
        grid=(grid,),
        in_specs=[
            pl.BlockSpec((tile_b, obs_size), lambda i: (i, 0)),   # x
            pl.BlockSpec((tile_b, act_size), lambda i: (i, 0)),   # a
            resident((obs_size, HID1P)),                          # w1 (bf16)
            resident((1, HID1P)),                                 # b1
            resident((HID1P, HID2P)),                             # w2_obs (bf16)
            resident((act_size, HID2P)),                          # w2_act (bf16)
            resident((1, HID2P)),                                 # b2
            resident((HID2P, atoms_pad)),                         # w3 (bf16, padded)
            resident((1, atoms_pad)),                             # b3 (mask baked in)
            resident((1, atoms_pad)),                             # supports (0-padded)
        ],
        out_specs=[
            pl.BlockSpec((tile_b, n_atoms), lambda i: (i, 0)),    # distr (real lanes)
            pl.BlockSpec((tile_b, 1), lambda i: (i, 0)),          # q
        ],
        out_shape=[
            jax.ShapeDtypeStruct((b_pad, n_atoms), jnp.float32),
            jax.ShapeDtypeStruct((b_pad, 1), jnp.float32),
        ],
        compiler_params=pltpu.CompilerParams(
            dimension_semantics=("parallel",)),
    )(x, a,
      params["w1"], params["b1"],
      params["w2_obs"], params["w2_act"], params["b2"],
      params["w3"], params["b3"], params["supports_pad"])

    if b_pad != B:            # only when B isn't a multiple of the tile
        distr = distr[:B]
        q = q[:B]
    return distr, q


# ----------------------------- param init ----------------------------------- #

def init_d4pg_critic_params(key, obs_size, act_size, n_atoms, v_min, v_max):
    """PyTorch-default-style init (U[-1/sqrt(fan_in), +]).  Weights bf16, biases
    f32.  Hidden dims padded 400->512, 300->384 and atoms padded to a multiple of
    128 so all matmul K/N dims are lane-dense; padded b3 lanes carry the softmax
    mask (-1e30), padded supports are 0."""
    def linear(key, fan_in, fan_out):
        kw, kb = jax.random.split(key)
        bound = float(fan_in) ** -0.5
        w = jax.random.uniform(kw, (fan_in, fan_out), jnp.float32, -bound, bound)
        b = jax.random.uniform(kb, (1, fan_out), jnp.float32, -bound, bound)
        return w, b

    k1, k2, k3 = jax.random.split(key, 3)
    w1, b1 = linear(k1, obs_size, HID1)
    # single Linear(400 + act_size, 300), split row-wise into obs/act parts
    w2, b2 = linear(k2, HID1 + act_size, HID2)
    w3, b3 = linear(k3, HID2, n_atoms)

    atoms_pad = max(LANE, _round_up(n_atoms, LANE))

    w1p = jnp.zeros((obs_size, HID1P), jnp.float32).at[:, :HID1].set(w1)
    b1p = jnp.zeros((1, HID1P), jnp.float32).at[:, :HID1].set(b1)

    w2_obs = jnp.zeros((HID1P, HID2P), jnp.float32).at[:HID1, :HID2].set(w2[:HID1])
    w2_act = jnp.zeros((act_size, HID2P), jnp.float32).at[:, :HID2].set(w2[HID1:])
    b2p = jnp.zeros((1, HID2P), jnp.float32).at[:, :HID2].set(b2)

    w3p = jnp.zeros((HID2P, atoms_pad), jnp.float32).at[:HID2, :n_atoms].set(w3)
    # Softmax mask baked into the padded bias lanes (padded w3 columns are 0, so
    # padded logits are exactly -1e30 and exp underflows to 0 in f32).
    b3p = jnp.full((1, atoms_pad), NEG_BIG, jnp.float32).at[:, :n_atoms].set(b3)

    supports = jnp.linspace(v_min, v_max, n_atoms, dtype=jnp.float32)
    supports_pad = jnp.zeros((1, atoms_pad), jnp.float32).at[0, :n_atoms].set(supports)

    return {
        "n_atoms": n_atoms,
        "w1": w1p.astype(jnp.bfloat16), "b1": b1p,
        "w2_obs": w2_obs.astype(jnp.bfloat16),
        "w2_act": w2_act.astype(jnp.bfloat16),
        "b2": b2p,
        "w3": w3p.astype(jnp.bfloat16), "b3": b3p,
        "supports": supports,
        "supports_pad": supports_pad,
    }


# ----------------------------- main ------------------------------------------ #

if __name__ == "__main__":
    obs_size, act_size, n_atoms = 8, 4, 51
    v_min, v_max = -10.0, 10.0
    batch = 2

    root = jax.random.PRNGKey(0)
    k_params, k_x, k_a = jax.random.split(root, 3)

    params = init_d4pg_critic_params(k_params, obs_size, act_size,
                                     n_atoms, v_min, v_max)

    x = jax.random.normal(k_x, (batch, obs_size), jnp.float32)
    a = jax.random.normal(k_a, (batch, act_size), jnp.float32)

    distr, q = d4pg_critic_forward(x, a, params)
    jax.block_until_ready((distr, q))

    # Pure-JAX reference of the same math (same bf16 weights, f32 accumulation).
    xb = x.astype(jnp.bfloat16)
    ab = a.astype(jnp.bfloat16)
    obs_ref = jnp.maximum(
        jnp.dot(xb, params["w1"], preferred_element_type=jnp.float32)
        + params["b1"], 0.0)
    h_ref = jnp.maximum(
        jnp.dot(obs_ref.astype(jnp.bfloat16), params["w2_obs"],
                preferred_element_type=jnp.float32)
        + jnp.dot(ab, params["w2_act"], preferred_element_type=jnp.float32)
        + params["b2"], 0.0)
    distr_ref = (jnp.dot(h_ref.astype(jnp.bfloat16), params["w3"],
                         preferred_element_type=jnp.float32)
                 + params["b3"])[:, :n_atoms]
    p_ref = jax.nn.softmax(distr_ref, axis=1)
    q_ref = jnp.sum(p_ref * params["supports"][None, :], axis=1, keepdims=True)

    assert distr.shape == (batch, n_atoms)
    assert q.shape == (batch, 1)
    assert jnp.allclose(distr, distr_ref, atol=1e-3, rtol=1e-3), \
        float(jnp.max(jnp.abs(distr - distr_ref)))
    assert jnp.allclose(q, q_ref, atol=2e-2, rtol=2e-2), \
        float(jnp.max(jnp.abs(q - q_ref)))

    print("KERNEL_OK")
</pallas_src>

<mosaic_0001>
module attributes {stable_mosaic.version = 11 : i64} {
  func.func @_critic_fused_kernel(%arg0: i32, %arg1: memref<2x8xf32, #tpu.memory_space<vmem>>, %arg2: memref<2x4xf32, #tpu.memory_space<vmem>>, %arg3: memref<8x512xbf16, #tpu.memory_space<vmem>>, %arg4: memref<1x512xf32, #tpu.memory_space<vmem>>, %arg5: memref<512x384xbf16, #tpu.memory_space<vmem>>, %arg6: memref<4x384xbf16, #tpu.memory_space<vmem>>, %arg7: memref<1x384xf32, #tpu.memory_space<vmem>>, %arg8: memref<384x128xbf16, #tpu.memory_space<vmem>>, %arg9: memref<1x128xf32, #tpu.memory_space<vmem>>, %arg10: memref<1x128xf32, #tpu.memory_space<vmem>>, %arg11: memref<2x51xf32, #tpu.memory_space<vmem>>, %arg12: memref<2x1xf32, #tpu.memory_space<vmem>>) attributes {dimension_semantics = [#tpu.dimension_semantics<parallel>], iteration_bounds = array<i64: 1>, scalar_prefetch = 0 : i64, scratch_operands = 0 : i64, tpu.core_type = #tpu.core_type<tc>, window_params = [{transform_indices = @transform_0, window_bounds = array<i64: 2, 8>}, {transform_indices = @transform_1, window_bounds = array<i64: 2, 4>}, {pipeline_mode = #tpu.pipeline_mode<synchronous>, transform_indices = @transform_2, window_bounds = array<i64: 8, 512>}, {pipeline_mode = #tpu.pipeline_mode<synchronous>, transform_indices = @transform_3, window_bounds = array<i64: 1, 512>}, {pipeline_mode = #tpu.pipeline_mode<synchronous>, transform_indices = @transform_4, window_bounds = array<i64: 512, 384>}, {pipeline_mode = #tpu.pipeline_mode<synchronous>, transform_indices = @transform_5, window_bounds = array<i64: 4, 384>}, {pipeline_mode = #tpu.pipeline_mode<synchronous>, transform_indices = @transform_6, window_bounds = array<i64: 1, 384>}, {pipeline_mode = #tpu.pipeline_mode<synchronous>, transform_indices = @transform_7, window_bounds = array<i64: 384, 128>}, {pipeline_mode = #tpu.pipeline_mode<synchronous>, transform_indices = @transform_8, window_bounds = array<i64: 1, 128>}, {pipeline_mode = #tpu.pipeline_mode<synchronous>, transform_indices = @transform_9, window_bounds = array<i64: 1, 128>}, {transform_indices = @transform_10, window_bounds = array<i64: 2, 51>}, {transform_indices = @transform_11, window_bounds = array<i64: 2, 1>}]} {
    %c0 = arith.constant 0 : index
    %c0_0 = arith.constant 0 : index
    %0 = vector.load %arg1[%c0, %c0_0] : memref<2x8xf32, #tpu.memory_space<vmem>>, vector<2x8xf32>
    %1 = arith.truncf %0 : vector<2x8xf32> to vector<2x8xbf16>
    %c0_1 = arith.constant 0 : index
    %c0_2 = arith.constant 0 : index
    %2 = vector.load %arg2[%c0_1, %c0_2] : memref<2x4xf32, #tpu.memory_space<vmem>>, vector<2x4xf32>
    %3 = arith.truncf %2 : vector<2x4xf32> to vector<2x4xbf16>
    %c0_3 = arith.constant 0 : index
    %c0_4 = arith.constant 0 : index
    %4 = vector.load %arg3[%c0_3, %c0_4] : memref<8x512xbf16, #tpu.memory_space<vmem>>, vector<8x512xbf16>
    %cst = arith.constant dense<0.000000e+00> : vector<2x512xf32>
    %5 = tpu.matmul %1, %4, %cst {dimension_numbers = #tpu.dot_dimension_numbers<[1], [0], [0], [1], [0, 0, 1, 1], [], []>} : vector<2x8xbf16>, vector<8x512xbf16>, vector<2x512xf32> -> vector<2x512xf32>
    %c0_5 = arith.constant 0 : index
    %c0_6 = arith.constant 0 : index
    %6 = vector.load %arg4[%c0_5, %c0_6] : memref<1x512xf32, #tpu.memory_space<vmem>>, vector<1x512xf32>
    %7 = vector.broadcast %6 : vector<1x512xf32> to vector<2x512xf32>
    %8 = arith.addf %5, %7 : vector<2x512xf32>
    %cst_7 = arith.constant 0.000000e+00 : f32
    %9 = vector.broadcast %cst_7 : f32 to vector<2x512xf32>
    %10 = arith.maximumf %8, %9 : vector<2x512xf32>
    %11 = arith.truncf %10 : vector<2x512xf32> to vector<2x512xbf16>
    %c0_8 = arith.constant 0 : index
    %c0_9 = arith.constant 0 : index
    %12 = vector.load %arg5[%c0_8, %c0_9] : memref<512x384xbf16, #tpu.memory_space<vmem>>, vector<512x384xbf16>
    %cst_10 = arith.constant dense<0.000000e+00> : vector<2x384xf32>
    %13 = tpu.matmul %11, %12, %cst_10 {dimension_numbers = #tpu.dot_dimension_numbers<[1], [0], [0], [1], [0, 0, 1, 1], [], []>} : vector<2x512xbf16>, vector<512x384xbf16>, vector<2x384xf32> -> vector<2x384xf32>
    %c0_11 = arith.constant 0 : index
    %c0_12 = arith.constant 0 : index
    %14 = vector.load %arg6[%c0_11, %c0_12] : memref<4x384xbf16, #tpu.memory_space<vmem>>, vector<4x384xbf16>
    %cst_13 = arith.constant dense<0.000000e+00> : vector<2x384xf32>
    %15 = tpu.matmul %3, %14, %cst_13 {dimension_numbers = #tpu.dot_dimension_numbers<[1], [0], [0], [1], [0, 0, 1, 1], [], []>} : vector<2x4xbf16>, vector<4x384xbf16>, vector<2x384xf32> -> vector<2x384xf32>
    %16 = arith.addf %13, %15 : vector<2x384xf32>
    %c0_14 = arith.constant 0 : index
    %c0_15 = arith.constant 0 : index
    %17 = vector.load %arg7[%c0_14, %c0_15] : memref<1x384xf32, #tpu.memory_space<vmem>>, vector<1x384xf32>
    %18 = vector.broadcast %17 : vector<1x384xf32> to vector<2x384xf32>
    %19 = arith.addf %16, %18 : vector<2x384xf32>
    %cst_16 = arith.constant 0.000000e+00 : f32
    %20 = vector.broadcast %cst_16 : f32 to vector<2x384xf32>
    %21 = arith.maximumf %19, %20 : vector<2x384xf32>
    %22 = arith.truncf %21 : vector<2x384xf32> to vector<2x384xbf16>
    %c0_17 = arith.constant 0 : index
    %c0_18 = arith.constant 0 : index
    %23 = vector.load %arg8[%c0_17, %c0_18] : memref<384x128xbf16, #tpu.memory_space<vmem>>, vector<384x128xbf16>
    %cst_19 = arith.constant dense<0.000000e+00> : vector<2x128xf32>
    %24 = tpu.matmul %22, %23, %cst_19 {dimension_numbers = #tpu.dot_dimension_numbers<[1], [0], [0], [1], [0, 0, 1, 1], [], []>} : vector<2x384xbf16>, vector<384x128xbf16>, vector<2x128xf32> -> vector<2x128xf32>
    %c0_20 = arith.constant 0 : index
    %c0_21 = arith.constant 0 : index
    %25 = vector.load %arg9[%c0_20, %c0_21] : memref<1x128xf32, #tpu.memory_space<vmem>>, vector<1x128xf32>
    %26 = vector.broadcast %25 : vector<1x128xf32> to vector<2x128xf32>
    %27 = arith.addf %24, %26 : vector<2x128xf32>
    %28 = vector.extract_strided_slice %27 {offsets = [0, 0], sizes = [2, 51], strides = [1, 1]} : vector<2x128xf32> to vector<2x51xf32>
    %c0_22 = arith.constant 0 : index
    %c0_23 = arith.constant 0 : index
    %29 = vector.load %arg11[%c0_22, %c0_23] : memref<2x51xf32, #tpu.memory_space<vmem>>, vector<2x51xf32>
    tpu.vector_store %arg11[%c0_22, %c0_23], %28 {strides = array<i32>} : memref<2x51xf32, #tpu.memory_space<vmem>>, vector<2x51xf32>,
    %cst_24 = arith.constant dense<0xFF800000> : vector<2xf32>
    %30 = vector.multi_reduction <maximumf>, %27, %cst_24 [1] : vector<2x128xf32> to vector<2xf32>
    %31 = vector.shape_cast %30 : vector<2xf32> to vector<2x1xf32>
    %32 = vector.broadcast %31 : vector<2x1xf32> to vector<2x128xf32>
    %33 = arith.subf %27, %32 : vector<2x128xf32>
    %34 = math.exp %33 : vector<2x128xf32>
    %c0_25 = arith.constant 0 : index
    %c0_26 = arith.constant 0 : index
    %35 = vector.load %arg10[%c0_25, %c0_26] : memref<1x128xf32, #tpu.memory_space<vmem>>, vector<1x128xf32>
    %36 = vector.broadcast %35 : vector<1x128xf32> to vector<2x128xf32>
    %37 = arith.mulf %34, %36 : vector<2x128xf32>
    %cst_27 = arith.constant dense<0.000000e+00> : vector<2xf32>
    %38 = vector.multi_reduction <add>, %37, %cst_27 [1] : vector<2x128xf32> to vector<2xf32>
    %39 = vector.shape_cast %38 : vector<2xf32> to vector<2x1xf32>
    %cst_28 = arith.constant dense<0.000000e+00> : vector<2xf32>
    %40 = vector.multi_reduction <add>, %34, %cst_28 [1] : vector<2x128xf32> to vector<2xf32>
    %41 = vector.shape_cast %40 : vector<2xf32> to vector<2x1xf32>
    %42 = tpu.reciprocal %41 {approx = true} : vector<2x1xf32> -> vector<2x1xf32>
    %43 = arith.mulf %39, %42 : vector<2x1xf32>
    %c0_29 = arith.constant 0 : index
    %c0_30 = arith.constant 0 : index
    %44 = vector.load %arg12[%c0_29, %c0_30] : memref<2x1xf32, #tpu.memory_space<vmem>>, vector<2x1xf32>
    tpu.vector_store %arg12[%c0_29, %c0_30], %43 {strides = array<i32>} : memref<2x1xf32, #tpu.memory_space<vmem>>, vector<2x1xf32>,
    return
  }
  func.func @transform_0(%arg0: i32) -> (i32, i32) {
    %c0_i32 = arith.constant 0 : i32
    %c0_i32_0 = arith.constant 0 : i32
    return %arg0, %c0_i32 : i32, i32
  }
  func.func @transform_1(%arg0: i32) -> (i32, i32) {
    %c0_i32 = arith.constant 0 : i32
    %c0_i32_0 = arith.constant 0 : i32
    return %arg0, %c0_i32 : i32, i32
  }
  func.func @transform_2(%arg0: i32) -> (i32, i32) {
    %c0_i32 = arith.constant 0 : i32
    %c0_i32_0 = arith.constant 0 : i32
    %c0_i32_1 = arith.constant 0 : i32
    return %c0_i32, %c0_i32_0 : i32, i32
  }
  func.func @transform_3(%arg0: i32) -> (i32, i32) {
    %c0_i32 = arith.constant 0 : i32
    %c0_i32_0 = arith.constant 0 : i32
    %c0_i32_1 = arith.constant 0 : i32
    return %c0_i32, %c0_i32_0 : i32, i32
  }
  func.func @transform_4(%arg0: i32) -> (i32, i32) {
    %c0_i32 = arith.constant 0 : i32
    %c0_i32_0 = arith.constant 0 : i32
    %c0_i32_1 = arith.constant 0 : i32
    return %c0_i32, %c0_i32_0 : i32, i32
  }
  func.func @transform_5(%arg0: i32) -> (i32, i32) {
    %c0_i32 = arith.constant 0 : i32
    %c0_i32_0 = arith.constant 0 : i32
    %c0_i32_1 = arith.constant 0 : i32
    return %c0_i32, %c0_i32_0 : i32, i32
  }
  func.func @transform_6(%arg0: i32) -> (i32, i32) {
    %c0_i32 = arith.constant 0 : i32
    %c0_i32_0 = arith.constant 0 : i32
    %c0_i32_1 = arith.constant 0 : i32
    return %c0_i32, %c0_i32_0 : i32, i32
  }
  func.func @transform_7(%arg0: i32) -> (i32, i32) {
    %c0_i32 = arith.constant 0 : i32
    %c0_i32_0 = arith.constant 0 : i32
    %c0_i32_1 = arith.constant 0 : i32
    return %c0_i32, %c0_i32_0 : i32, i32
  }
  func.func @transform_8(%arg0: i32) -> (i32, i32) {
    %c0_i32 = arith.constant 0 : i32
    %c0_i32_0 = arith.constant 0 : i32
    %c0_i32_1 = arith.constant 0 : i32
    return %c0_i32, %c0_i32_0 : i32, i32
  }
  func.func @transform_9(%arg0: i32) -> (i32, i32) {
    %c0_i32 = arith.constant 0 : i32
    %c0_i32_0 = arith.constant 0 : i32
    %c0_i32_1 = arith.constant 0 : i32
    return %c0_i32, %c0_i32_0 : i32, i32
  }
  func.func @transform_10(%arg0: i32) -> (i32, i32) {
    %c0_i32 = arith.constant 0 : i32
    %c0_i32_0 = arith.constant 0 : i32
    return %arg0, %c0_i32 : i32, i32
  }
  func.func @transform_11(%arg0: i32) -> (i32, i32) {
    %c0_i32 = arith.constant 0 : i32
    %c0_i32_0 = arith.constant 0 : i32
    return %arg0, %c0_i32 : i32, i32
  }
}

</mosaic_0001>

<llo_original>
// kernel: tpu_custom_call.1
$region0: #{tpu_custom_call.1}
  #allocation0 [shape = 'u32[]', space=smem, size = 0x4, offset = 0x4, fixed_abs, tag = 'smem constant byte address 0x4 - core index']
  #allocation1 [shape = 'u32[72,128]{1,0:T(1,128)}', space=vmem, size = 0x9000, scoped, tag = 'internal scratch']
  %s0 = inlined_call_operand.hbm [shape: f32[2,8], index: 0, kind: input, shape index: {}]
  %s1 = inlined_call_operand.hbm [shape: f32[2,4], index: 1, kind: input, shape index: {}]
  %s2 = inlined_call_operand.hbm [shape: bf16[8,512], index: 2, kind: input, shape index: {}]
  %s3 = inlined_call_operand.hbm [shape: f32[1,512], index: 3, kind: input, shape index: {}]
  %s4 = inlined_call_operand.hbm [shape: bf16[512,384], index: 4, kind: input, shape index: {}]
  %s5 = inlined_call_operand.hbm [shape: bf16[4,384], index: 5, kind: input, shape index: {}]
  %s6 = inlined_call_operand.vmem [shape: f32[1,384], index: 6, kind: input, shape index: {}]
  %s7 = inlined_call_operand.hbm [shape: bf16[384,128], index: 7, kind: input, shape index: {}]
  %s8 = inlined_call_operand.vmem [shape: f32[1,128], index: 8, kind: input, shape index: {}]
  %s9 = inlined_call_operand.vmem [shape: f32[1,128], index: 9, kind: input, shape index: {}]
  %s10 = inlined_call_operand.hbm [shape: f32[2,51], index: 10, kind: output, shape index: {0}]
  %s11 = inlined_call_operand.vmem [shape: f32[2,1], index: 11, kind: output, shape index: {1}]
  %12 = xla_tuple %s10, %s11
  %s13 = sld [smem:[#allocation0]]
  $region86: #{tpu_custom_call.1} parent=0
    _
  %s15 = ssub.s32 1, %s13
  %s16 = scalar_select 0, %s15, %s13
  $region1: #{tpu_custom_call.1} parent=0
    #allocation2 [shape = 'u8[1024]{0}', space=vmem, size = 0x400, scoped, tag = 'input window, operand 0, single buffered']
    #allocation3 [shape = 's32[1]{0}', space=sflag, size = 0x4, scoped, tag = 'scoped memory for tpu_custom_call.1']
    #allocation4 [shape = 's32[1]{0}', space=sflag, size = 0x4, scoped, tag = 'scoped memory for tpu_custom_call.1']
    #allocation5 [shape = 'u8[1024]{0}', space=vmem, size = 0x400, scoped, tag = 'input window, operand 1, single buffered']
    #allocation6 [shape = 's32[1]{0}', space=sflag, size = 0x4, scoped, tag = 'scoped memory for tpu_custom_call.1']
    #allocation7 [shape = 'u8[8192]{0}', space=vmem, size = 0x2000, scoped, tag = 'input window, operand 2, single buffered']
    #allocation8 [shape = 'u8[2048]{0}', space=vmem, size = 0x800, scoped, tag = 'input window, operand 3, single buffered']
    #allocation9 [shape = 's32[1]{0}', space=sflag, size = 0x4, scoped, tag = 'scoped memory for tpu_custom_call.1']
    #allocation10 [shape = 'u8[393216]{0}', space=vmem, size = 0x60000, scoped, tag = 'input window, operand 4, single buffered']
    #allocation11 [shape = 'u8[3072]{0}', space=vmem, size = 0xc00, scoped, tag = 'input window, operand 5, single buffered']
    #allocation12 [shape = 's32[1]{0}', space=sflag, size = 0x4, scoped, tag = 'scoped memory for tpu_custom_call.1']
    #allocation13 [shape = 'u8[98304]{0}', space=vmem, size = 0x18000, scoped, tag = 'input window, operand 7, single buffered']
    #allocation14 [shape = 'u8[1024]{0}', space=vmem, size = 0x400, scoped, tag = 'output window, operand 0, single buffered']
    %17 = vsyncpa [#allocation3], 0
    %18 = vsyncpa [#allocation6], 0
    %19 = vsyncpa [#allocation9], 0
    %20 = vsyncpa [#allocation12], 0
    %21 = vsyncpa [#allocation4], 0
    // Predicated region
    $region2: #{tpu_custom_call.1} parent=1 // pred_check
      _
    $region3: #{tpu_custom_call.1} parent=1 // pred_check_branch
      %23 = sbr.rel (0) target = $region5
    $region4: #{tpu_custom_call.1} parent=1 // pred_region
      %25 = vsyncadd [#allocation3], 0
      %s27 = sshll.u32 %s0, 4
      %s28 = int_to_ptr.hbm [resolvable:$true] %s27
      %s29 = sshll.u32 [#allocation2], 4
      %s30 = int_to_ptr.vmem [resolvable:$true] %s29
      %32 = dma.hbm_to_vmem [thread:$0]  %s28, 32, %s30, [#allocation3]
    $region5: #{tpu_custom_call.1} parent=1 // pred_fallthru
      _
    // Predicated region
    $region6: #{tpu_custom_call.1} parent=1 // pred_check
      _
    $region7: #{tpu_custom_call.1} parent=1 // pred_check_branch
      %34 = sbr.rel (0) target = $region9
    $region8: #{tpu_custom_call.1} parent=1 // pred_region
      %36 = vsyncadd [#allocation6], 0
      %s38 = sshll.u32 %s1, 4
      %s39 = int_to_ptr.hbm [resolvable:$true] %s38
      %s40 = sshll.u32 [#allocation5], 4
      %s41 = int_to_ptr.vmem [resolvable:$true] %s40
      %43 = dma.hbm_to_vmem [thread:$0]  %s39, 32, %s41, [#allocation6]
    $region9: #{tpu_custom_call.1} parent=1 // pred_fallthru
      _
    // Predicated region
    $region10: #{tpu_custom_call.1} parent=1 // pred_check
      _
    $region11: #{tpu_custom_call.1} parent=1 // pred_check_branch
      %45 = sbr.rel (0) target = $region13
    $region12: #{tpu_custom_call.1} parent=1 // pred_region
      %47 = vsyncadd [#allocation6], 0
      %s49 = sshll.u32 %s2, 4
      %s50 = int_to_ptr.hbm [resolvable:$true] %s49
      %s51 = sshll.u32 [#allocation7], 4
      %s52 = int_to_ptr.vmem [resolvable:$true] %s51
      %54 = dma.hbm_to_vmem [thread:$0]  %s50, 256, %s52, [#allocation6]
    $region13: #{tpu_custom_call.1} parent=1 // pred_fallthru
      _
    // Predicated region
    $region14: #{tpu_custom_call.1} parent=1 // pred_check
      _
    $region15: #{tpu_custom_call.1} parent=1 // pred_check_branch
      %56 = sbr.rel (0) target = $region17
    $region16: #{tpu_custom_call.1} parent=1 // pred_region
      %58 = vsyncadd [#allocation9], 0
      %s60 = sshll.u32 %s3, 4
      %s61 = int_to_ptr.hbm [resolvable:$true] %s60
      %s62 = sshll.u32 [#allocation8], 4
      %s63 = int_to_ptr.vmem [resolvable:$true] %s62
      %65 = dma.hbm_to_vmem [thread:$0]  %s61, 64, %s63, [#allocation9]
    $region17: #{tpu_custom_call.1} parent=1 // pred_fallthru
      _
    // Predicated region
    $region18: #{tpu_custom_call.1} parent=1 // pred_check
      _
    $region19: #{tpu_custom_call.1} parent=1 // pred_check_branch
      %67 = sbr.rel (0) target = $region21
    $region20: #{tpu_custom_call.1} parent=1 // pred_region
      %69 = vsyncadd [#allocation9], 0
      %s70 = sshll.u32 %s4, 4
      %s71 = int_to_ptr.hbm [resolvable:$true] %s70
      %s72 = sshll.u32 [#allocation10], 4
      %s73 = int_to_ptr.vmem [resolvable:$true] %s72
      %78 = dma.hbm_to_vmem [thread:$0]  %s71, 12288, %s73, [#allocation9], 192, 192, 12
    $region21: #{tpu_custom_call.1} parent=1 // pred_fallthru
      _
    // Predicated region
    $region22: #{tpu_custom_call.1} parent=1 // pred_check
      _
    $region23: #{tpu_custom_call.1} parent=1 // pred_check_branch
      %80 = sbr.rel (0) target = $region25
    $region24: #{tpu_custom_call.1} parent=1 // pred_region
      %82 = vsyncadd [#allocation12], 0
      %s84 = sshll.u32 %s5, 4
      %s85 = int_to_ptr.hbm [resolvable:$true] %s84
      %s86 = sshll.u32 [#allocation11], 4
      %s87 = int_to_ptr.vmem [resolvable:$true] %s86
      %89 = dma.hbm_to_vmem [thread:$0]  %s85, 96, %s87, [#allocation12]
    $region25: #{tpu_custom_call.1} parent=1 // pred_fallthru
      _
    // Predicated region
    $region26: #{tpu_custom_call.1} parent=1 // pred_check
      _
    $region27: #{tpu_custom_call.1} parent=1 // pred_check_branch
      %91 = sbr.rel (0) target = $region29
    $region28: #{tpu_custom_call.1} parent=1 // pred_region
      _
    $region29: #{tpu_custom_call.1} parent=1 // pred_fallthru
      _
    // Predicated region
    $region30: #{tpu_custom_call.1} parent=1 // pred_check
      _
    $region31: #{tpu_custom_call.1} parent=1 // pred_check_branch
      %93 = sbr.rel (0) target = $region33
    $region32: #{tpu_custom_call.1} parent=1 // pred_region
      %95 = vsyncadd [#allocation12], 0
      %s96 = sshll.u32 %s7, 4
      %s97 = int_to_ptr.hbm [resolvable:$true] %s96
      %s98 = sshll.u32 [#allocation13], 4
      %s99 = int_to_ptr.vmem [resolvable:$true] %s98
      %104 = dma.hbm_to_vmem [thread:$0]  %s97, 3072, %s99, [#allocation12], 64, 64, 4
    $region33: #{tpu_custom_call.1} parent=1 // pred_fallthru
      _
    // Predicated region
    $region34: #{tpu_custom_call.1} parent=1 // pred_check
      _
    $region35: #{tpu_custom_call.1} parent=1 // pred_check_branch
      %106 = sbr.rel (0) target = $region37
    $region36: #{tpu_custom_call.1} parent=1 // pred_region
      _
    $region37: #{tpu_custom_call.1} parent=1 // pred_fallthru
      _
    // Predicated region
    $region38: #{tpu_custom_call.1} parent=1 // pred_check
      _
    $region39: #{tpu_custom_call.1} parent=1 // pred_check_branch
      %108 = sbr.rel (0) target = $region41
    $region40: #{tpu_custom_call.1} parent=1 // pred_region
      _
    $region41: #{tpu_custom_call.1} parent=1 // pred_fallthru
      _
    // Predicated region
    $region42: #{tpu_custom_call.1} parent=1 // pred_check
      _
    $region43: #{tpu_custom_call.1} parent=1 // pred_check_branch
      %110 = sbr.rel (0) target = $region45
    $region44: #{tpu_custom_call.1} parent=1 // pred_region
      %112 = dma.done [#allocation3], 32
    $region45: #{tpu_custom_call.1} parent=1 // pred_fallthru
      _
    // Predicated region
    $region46: #{tpu_custom_call.1} parent=1 // pred_check
      _
    $region47: #{tpu_custom_call.1} parent=1 // pred_check_branch
      %114 = sbr.rel (0) target = $region49
    $region48: #{tpu_custom_call.1} parent=1 // pred_region
      %116 = dma.done [#allocation6], 32
    $region49: #{tpu_custom_call.1} parent=1 // pred_fallthru
      _
    // Predicated region
    $region50: #{tpu_custom_call.1} parent=1 // pred_check
      _
    $region51: #{tpu_custom_call.1} parent=1 // pred_check_branch
      %118 = sbr.rel (0) target = $region53
    $region52: #{tpu_custom_call.1} parent=1 // pred_region
      %120 = dma.done [#allocation6], 256
    $region53: #{tpu_custom_call.1} parent=1 // pred_fallthru
      _
    // Predicated region
    $region54: #{tpu_custom_call.1} parent=1 // pred_check
      _
    $region55: #{tpu_custom_call.1} parent=1 // pred_check_branch
      %122 = sbr.rel (0) target = $region57
    $region56: #{tpu_custom_call.1} parent=1 // pred_region
      %124 = dma.done [#allocation9], 64
    $region57: #{tpu_custom_call.1} parent=1 // pred_fallthru
      _
    // Predicated region
    $region58: #{tpu_custom_call.1} parent=1 // pred_check
      _
    $region59: #{tpu_custom_call.1} parent=1 // pred_check_branch
      %126 = sbr.rel (0) target = $region61
    $region60: #{tpu_custom_call.1} parent=1 // pred_region
      %128 = dma.done [#allocation9], 12288
    $region61: #{tpu_custom_call.1} parent=1 // pred_fallthru
      _
    // Predicated region
    $region62: #{tpu_custom_call.1} parent=1 // pred_check
      _
    $region63: #{tpu_custom_call.1} parent=1 // pred_check_branch
      %130 = sbr.rel (0) target = $region65
    $region64: #{tpu_custom_call.1} parent=1 // pred_region
      %132 = dma.done [#allocation12], 96
    $region65: #{tpu_custom_call.1} parent=1 // pred_fallthru
      _
    // Predicated region
    $region66: #{tpu_custom_call.1} parent=1 // pred_check
      _
    $region67: #{tpu_custom_call.1} parent=1 // pred_check_branch
      %134 = sbr.rel (0) target = $region69
    $region68: #{tpu_custom_call.1} parent=1 // pred_region
      %136 = dma.done [#allocation12], 3072
    $region69: #{tpu_custom_call.1} parent=1 // pred_fallthru
      _
    %v138 = vld [vmem:[#allocation2] sm:$0x3]
    %v139 = vpack.c.bf16 %v138, %v138
    %v140 = vld [vmem:[#allocation5] sm:$0x3]
    %v141 = vpack.c.bf16 %v140, %v140
    %v142 = vld [vmem:[#allocation7] sm:$0xff]
    %v143 = vld [vmem:[#allocation7 + $0x8] sm:$0xff]
    %v144 = vld [vmem:[#allocation8] sm:$0xf]
    %v146 = vperm.slane %v144, 0
    %v147 = vperm.slane %v144, 1
    %v148 = vperm.slane %v144, 2
    %v149 = vperm.slane %v144, 3
    %v156 = vunpack.c.l.b16 %v142
    %v157 = vunpack.c.h.b16 %v142
    %v158 = vunpack.c.l.b16 %v143
    %v159 = vunpack.c.h.b16 %v143
    %v160 = vpack.c.b16 %v156, %v156
    %v161 = vpack.c.b16 %v157, %v157
    %v162 = vpack.c.b16 %v158, %v158
    %v163 = vpack.c.b16 %v159, %v159
    %vm164 = vcmask 64512
    %v166 = vsel %vm164, %v139, 0
    %vm168 = vcmask 1043456
    %v170 = vsel %vm168, %v160, 0
    %v173 = vsel %vm168, %v161, 0
    %v176 = vsel %vm168, %v162, 0
    %v179 = vsel %vm168, %v163, 0
    %181 = vmatpush.bf16.msra.mxu0 0
    %182 = vmatpush.bf16.msra.mxu0 0
    %183 = vmatpush.bf16.msra.mxu0 0
    %184 = vmatpush.bf16.msra.mxu0 0
    %185 = vmatpush.bf16.msra.mxu0 0
    %186 = vmatpush.bf16.msra.mxu0 0
    %187 = vmatpush.bf16.msra.mxu0 0
    %188 = vmatpush.bf16.msra.mxu0 %v170
    %189 = vmatmul.bf16.gmra.mxu0 %v166
    %v190 = vpop.f32.mrf.mxu0
    %v191 = vadd.f32 %v146, %v190
    %v192 = vpop.f32.mrf.mxu0
    %193 = vdwg.mxu0
    %194 = vmatpush.bf16.msra.mxu0 0
    %195 = vmatpush.bf16.msra.mxu0 0
    %196 = vmatpush.bf16.msra.mxu0 0
    %197 = vmatpush.bf16.msra.mxu0 0
    %198 = vmatpush.bf16.msra.mxu0 0
    %199 = vmatpush.bf16.msra.mxu0 0
    %200 = vmatpush.bf16.msra.mxu0 0
    %201 = vmatpush.bf16.msra.mxu0 %v173
    %202 = vmatmul.bf16.gmra.mxu0 %v166
    %v203 = vpop.f32.mrf.mxu0
    %v204 = vadd.f32 %v147, %v203
    %v205 = vpop.f32.mrf.mxu0
    %206 = vdwg.mxu0
    %207 = vmatpush.bf16.msra.mxu0 0
    %208 = vmatpush.bf16.msra.mxu0 0
    %209 = vmatpush.bf16.msra.mxu0 0
    %210 = vmatpush.bf16.msra.mxu0 0
    %211 = vmatpush.bf16.msra.mxu0 0
    %212 = vmatpush.bf16.msra.mxu0 0
    %213 = vmatpush.bf16.msra.mxu0 0
    %214 = vmatpush.bf16.msra.mxu0 %v176
    %215 = vmatmul.bf16.gmra.mxu0 %v166
    %v216 = vpop.f32.mrf.mxu0
    %v217 = vadd.f32 %v148, %v216
    %v218 = vpop.f32.mrf.mxu0
    %219 = vdwg.mxu0
    %220 = vmatpush.bf16.msra.mxu0 0
    %221 = vmatpush.bf16.msra.mxu0 0
    %222 = vmatpush.bf16.msra.mxu0 0
    %223 = vmatpush.bf16.msra.mxu0 0
    %224 = vmatpush.bf16.msra.mxu0 0
    %225 = vmatpush.bf16.msra.mxu0 0
    %226 = vmatpush.bf16.msra.mxu0 0
    %227 = vmatpush.bf16.msra.mxu0 %v179
    %228 = vmatmul.bf16.gmra.mxu0 %v166
    %v229 = vpop.f32.mrf.mxu0
    %v230 = vadd.f32 %v149, %v229
    %v231 = vpop.f32.mrf.mxu0
    %232 = vdwg.mxu0
    %v233 = vmax.f32 %v191, 0.0
    %v234 = vmax.f32 %v204, 0.0
    %v235 = vmax.f32 %v217, 0.0
    %v236 = vmax.f32 %v230, 0.0
    %v237 = vpack.c.bf16 %v233, %v233
    %v238 = vpack.c.bf16 %v234, %v234
    %v239 = vpack.c.bf16 %v235, %v235
    %v240 = vpack.c.bf16 %v236, %v236
    %v241 = vld [vmem:[#allocation10] sm:$0xff]
    %v242 = vld [vmem:[#allocation10 + $0x8] sm:$0xf]
    %v243 = vld [vmem:[#allocation10 + $0xc] sm:$0xff]
    %v244 = vld [vmem:[#allocation10 + $0x14] sm:$0xf]
    %v245 = vld [vmem:[#allocation10 + $0x18] sm:$0xff]
    %v246 = vld [vmem:[#allocation10 + $0x20] sm:$0xf]
    %v247 = vld [vmem:[#allocation10 + $0x24] sm:$0xff]
    %v248 = vld [vmem:[#allocation10 + $0x2c] sm:$0xf]
    %v249 = vld [vmem:[#allocation10 + $0x30] sm:$0xff]
    %v250 = vld [vmem:[#allocation10 + $0x38] sm:$0xf]
    %v251 = vld [vmem:[#allocation10 + $0x3c] sm:$0xff]
    %v252 = vld [vmem:[#allocation10 + $0x44] sm:$0xf]
    %v253 = vld [vmem:[#allocation10 + $0x48] sm:$0xff]
    %v254 = vld [vmem:[#allocation10 + $0x50] sm:$0xf]
    %v255 = vld [vmem:[#allocation10 + $0x54] sm:$0xff]
    %v256 = vld [vmem:[#allocation10 + $0x5c] sm:$0xf]
    %v257 = vld [vmem:[#allocation10 + $0x60] sm:$0xff]
    %v258 = vld [vmem:[#allocation10 + $0x68] sm:$0xf]
    %v259 = vld [vmem:[#allocation10 + $0x6c] sm:$0xff]
    %v260 = vld [vmem:[#allocation10 + $0x74] sm:$0xf]
    %v261 = vld [vmem:[#allocation10 + $0x78] sm:$0xff]
    %v262 = vld [vmem:[#allocation10 + $0x80] sm:$0xf]
    %v263 = vld [vmem:[#allocation10 + $0x84] sm:$0xff]
    %v264 = vld [vmem:[#allocation10 + $0x8c] sm:$0xf]
    %v265 = vld [vmem:[#allocation10 + $0x90] sm:$0xff]
    %v266 = vld [vmem:[#allocation10 + $0x98] sm:$0xf]
    %v267 = vld [vmem:[#allocation10 + $0x9c] sm:$0xff]
    %v268 = vld [vmem:[#allocation10 + $0xa4] sm:$0xf]
    %v269 = vld [vmem:[#allocation10 + $0xa8] sm:$0xff]
    %v270 = vld [vmem:[#allocation10 + $0xb0] sm:$0xf]
    %v271 = vld [vmem:[#allocation10 + $0xb4] sm:$0xff]
    %v272 = vld [vmem:[#allocation10 + $0xbc] sm:$0xf]
    %v273 = vld [vmem:[#allocation10 + $0xc0] sm:$0xff]
    %v274 = vld [vmem:[#allocation10 + $0xc8] sm:$0xf]
    %v275 = vld [vmem:[#allocation10 + $0xcc] sm:$0xff]
    %v276 = vld [vmem:[#allocation10 + $0xd4] sm:$0xf]
    %v277 = vld [vmem:[#allocation10 + $0xd8] sm:$0xff]
    %v278 = vld [vmem:[#allocation10 + $0xe0] sm:$0xf]
    %v279 = vld [vmem:[#allocation10 + $0xe4] sm:$0xff]
    %v280 = vld [vmem:[#allocation10 + $0xec] sm:$0xf]
    %v281 = vld [vmem:[#allocation10 + $0xf0] sm:$0xff]
    %v282 = vld [vmem:[#allocation10 + $0xf8] sm:$0xf]
    %v283 = vld [vmem:[#allocation10 + $0xfc] sm:$0xff]
    %v284 = vld [vmem:[#allocation10 + $0x104] sm:$0xf]
    %v285 = vld [vmem:[#allocation10 + $0x108] sm:$0xff]
    %v286 = vld [vmem:[#allocation10 + $0x110] sm:$0xf]
    %v287 = vld [vmem:[#allocation10 + $0x114] sm:$0xff]
    %v288 = vld [vmem:[#allocation10 + $0x11c] sm:$0xf]
    %v289 = vld [vmem:[#allocation10 + $0x120] sm:$0xff]
    %v290 = vld [vmem:[#allocation10 + $0x128] sm:$0xf]
    %v291 = vld [vmem:[#allocation10 + $0x12c] sm:$0xff]
    %v292 = vld [vmem:[#allocation10 + $0x134] sm:$0xf]
    %v293 = vld [vmem:[#allocation10 + $0x138] sm:$0xff]
    %v294 = vld [vmem:[#allocation10 + $0x140] sm:$0xf]
    %v295 = vld [vmem:[#allocation10 + $0x144] sm:$0xff]
    %v296 = vld [vmem:[#allocation10 + $0x14c] sm:$0xf]
    %v297 = vld [vmem:[#allocation10 + $0x150] sm:$0xff]
    %v298 = vld [vmem:[#allocation10 + $0x158] sm:$0xf]
    %v299 = vld [vmem:[#allocation10 + $0x15c] sm:$0xff]
    %v300 = vld [vmem:[#allocation10 + $0x164] sm:$0xf]
    %v301 = vld [vmem:[#allocation10 + $0x168] sm:$0xff]
    %v302 = vld [vmem:[#allocation10 + $0x170] sm:$0xf]
    %v303 = vld [vmem:[#allocation10 + $0x174] sm:$0xff]
    %v304 = vld [vmem:[#allocation10 + $0x17c] sm:$0xf]
    %v305 = vld [vmem:[#allocation10 + $0x180] sm:$0xff]
    %v306 = vld [vmem:[#allocation10 + $0x188] sm:$0xf]
    %v307 = vld [vmem:[#allocation10 + $0x18c] sm:$0xff]
    %v308 = vld [vmem:[#allocation10 + $0x194] sm:$0xf]
    %v309 = vld [vmem:[#allocation10 + $0x198] sm:$0xff]
    %v310 = vld [vmem:[#allocation10 + $0x1a0] sm:$0xf]
    %v311 = vld [vmem:[#allocation10 + $0x1a4] sm:$0xff]
    %v312 = vld [vmem:[#allocation10 + $0x1ac] sm:$0xf]
    %v313 = vld [vmem:[#allocation10 + $0x1b0] sm:$0xff]
    %v314 = vld [vmem:[#allocation10 + $0x1b8] sm:$0xf]
    %v315 = vld [vmem:[#allocation10 + $0x1bc] sm:$0xff]
    %v316 = vld [vmem:[#allocation10 + $0x1c4] sm:$0xf]
    %v317 = vld [vmem:[#allocation10 + $0x1c8] sm:$0xff]
    %v318 = vld [vmem:[#allocation10 + $0x1d0] sm:$0xf]
    %v319 = vld [vmem:[#allocation10 + $0x1d4] sm:$0xff]
    %v320 = vld [vmem:[#allocation10 + $0x1dc] sm:$0xf]
    %v321 = vld [vmem:[#allocation10 + $0x1e0] sm:$0xff]
    %v322 = vld [vmem:[#allocation10 + $0x1e8] sm:$0xf]
    %v323 = vld [vmem:[#allocation10 + $0x1ec] sm:$0xff]
    %v324 = vld [vmem:[#allocation10 + $0x1f4] sm:$0xf]
    %v325 = vld [vmem:[#allocation10 + $0x1f8] sm:$0xff]
    %v326 = vld [vmem:[#allocation10 + $0x200] sm:$0xf]
    %v327 = vld [vmem:[#allocation10 + $0x204] sm:$0xff]
    %v328 = vld [vmem:[#allocation10 + $0x20c] sm:$0xf]
    %v329 = vld [vmem:[#allocation10 + $0x210] sm:$0xff]
    %v330 = vld [vmem:[#allocation10 + $0x218] sm:$0xf]
    %v331 = vld [vmem:[#allocation10 + $0x21c] sm:$0xff]
    %v332 = vld [vmem:[#allocation10 + $0x224] sm:$0xf]
    %v333 = vld [vmem:[#allocation10 + $0x228] sm:$0xff]
    %v334 = vld [vmem:[#allocation10 + $0x230] sm:$0xf]
    %v335 = vld [vmem:[#allocation10 + $0x234] sm:$0xff]
    %v336 = vld [vmem:[#allocation10 + $0x23c] sm:$0xf]
    %v337 = vld [vmem:[#allocation10 + $0x240] sm:$0xff]
    %v338 = vld [vmem:[#allocation10 + $0x248] sm:$0xf]
    %v339 = vld [vmem:[#allocation10 + $0x24c] sm:$0xff]
    %v340 = vld [vmem:[#allocation10 + $0x254] sm:$0xf]
    %v341 = vld [vmem:[#allocation10 + $0x258] sm:$0xff]
    %v342 = vld [vmem:[#allocation10 + $0x260] sm:$0xf]
    %v343 = vld [vmem:[#allocation10 + $0x264] sm:$0xff]
    %v344 = vld [vmem:[#allocation10 + $0x26c] sm:$0xf]
    %v345 = vld [vmem:[#allocation10 + $0x270] sm:$0xff]
    %v346 = vld [vmem:[#allocation10 + $0x278] sm:$0xf]
    %v347 = vld [vmem:[#allocation10 + $0x27c] sm:$0xff]
    %v348 = vld [vmem:[#allocation10 + $0x284] sm:$0xf]
    %v349 = vld [vmem:[#allocation10 + $0x288] sm:$0xff]
    %v350 = vld [vmem:[#allocation10 + $0x290] sm:$0xf]
    %v351 = vld [vmem:[#allocation10 + $0x294] sm:$0xff]
    %v352 = vld [vmem:[#allocation10 + $0x29c] sm:$0xf]
    %v353 = vld [vmem:[#allocation10 + $0x2a0] sm:$0xff]
    %v354 = vld [vmem:[#allocation10 + $0x2a8] sm:$0xf]
    %v355 = vld [vmem:[#allocation10 + $0x2ac] sm:$0xff]
    %v356 = vld [vmem:[#allocation10 + $0x2b4] sm:$0xf]
    %v357 = vld [vmem:[#allocation10 + $0x2b8] sm:$0xff]
    %v358 = vld [vmem:[#allocation10 + $0x2c0] sm:$0xf]
    %v359 = vld [vmem:[#allocation10 + $0x2c4] sm:$0xff]
    %v360 = vld [vmem:[#allocation10 + $0x2cc] sm:$0xf]
    %v361 = vld [vmem:[#allocation10 + $0x2d0] sm:$0xff]
    %v362 = vld [vmem:[#allocation10 + $0x2d8] sm:$0xf]
    %v363 = vld [vmem:[#allocation10 + $0x2dc] sm:$0xff]
    %v364 = vld [vmem:[#allocation10 + $0x2e4] sm:$0xf]
    %v365 = vld [vmem:[#allocation10 + $0x2e8] sm:$0xff]
    %v366 = vld [vmem:[#allocation10 + $0x2f0] sm:$0xf]
    %v367 = vld [vmem:[#allocation10 + $0x2f4] sm:$0xff]
    %v368 = vld [vmem:[#allocation10 + $0x2fc] sm:$0xf]
    %v369 = vld [vmem:[#allocation11] sm:$0x3f]
    %371 = vst [vmem:[#allocation1] ss:$4 sm:$0xff] %v369
    %v372 = vld.sshfl [vmem:[#allocation1] sm:$0xff pattern:$0x73625140]
    %v373 = vld.sshfl [vmem:[#allocation1 + $0x8] sm:$0xff pattern:$0x73625140]
    %v374 = vld.sshfl [vmem:[#allocation1 + $0x10] sm:$0xff pattern:$0x73625140]
    %vm375 = vcmask 31744
    %v377 = vsel %vm375, %v141, 0
    %vm379 = vcmask 1041408
    %v380 = vsel %vm379, %v372, 0
    %v382 = vsel %vm379, %v373, 0
    %v384 = vsel %vm379, %v374, 0
    %386 = vmatpush.bf16.msra.mxu0 0
    %387 = vmatpush.bf16.msra.mxu0 0
    %388 = vmatpush.bf16.msra.mxu0 0
    %389 = vmatpush.bf16.msra.mxu0 0
    %390 = vmatpush.bf16.msra.mxu0 0
    %391 = vmatpush.bf16.msra.mxu0 0
    %392 = vmatpush.bf16.msra.mxu0 0
    %393 = vmatpush.bf16.msra.mxu0 %v380
    %394 = vmatmul.bf16.gmra.mxu0 %v377
    %v395 = vpop.f32.mrf.mxu0
    %v396 = vadd.f32 0.0, %v395
    %v397 = vpop.f32.mrf.mxu0
    %398 = vdwg.mxu0
    %399 = vmatpush.bf16.msra.mxu0 0
    %400 = vmatpush.bf16.msra.mxu0 0
    %401 = vmatpush.bf16.msra.mxu0 0
    %402 = vmatpush.bf16.msra.mxu0 0
    %403 = vmatpush.bf16.msra.mxu0 0
    %404 = vmatpush.bf16.msra.mxu0 0
    %405 = vmatpush.bf16.msra.mxu0 0
    %406 = vmatpush.bf16.msra.mxu0 %v382
    %407 = vmatmul.bf16.gmra.mxu0 %v377
    %v408 = vpop.f32.mrf.mxu0
    %v409 = vadd.f32 0.0, %v408
    %v410 = vpop.f32.mrf.mxu0
    %411 = vdwg.mxu0
    %412 = vmatpush.bf16.msra.mxu0 0
    %413 = vmatpush.bf16.msra.mxu0 0
    %414 = vmatpush.bf16.msra.mxu0 0
    %415 = vmatpush.bf16.msra.mxu0 0
    %416 = vmatpush.bf16.msra.mxu0 0
    %417 = vmatpush.bf16.msra.mxu0 0
    %418 = vmatpush.bf16.msra.mxu0 0
    %419 = vmatpush.bf16.msra.mxu0 %v384
    %420 = vmatmul.bf16.gmra.mxu0 %v377
    %v421 = vpop.f32.mrf.mxu0
    %v422 = vadd.f32 0.0, %v421
    %v423 = vpop.f32.mrf.mxu0
    %424 = vdwg.mxu0
    %v553 = vunpack.c.l.b16 %v241
    %v554 = vunpack.c.h.b16 %v241
    %v555 = vunpack.c.l.b16 %v242
    %v556 = vunpack.c.l.b16 %v243
    %v557 = vunpack.c.h.b16 %v243
    %v558 = vunpack.c.l.b16 %v244
    %v559 = vunpack.c.l.b16 %v245
    %v560 = vunpack.c.h.b16 %v245
    %v561 = vunpack.c.l.b16 %v246
    %v562 = vunpack.c.l.b16 %v247
    %v563 = vunpack.c.h.b16 %v247
    %v564 = vunpack.c.l.b16 %v248
    %v565 = vunpack.c.l.b16 %v249
    %v566 = vunpack.c.h.b16 %v249
    %v567 = vunpack.c.l.b16 %v250
    %v568 = vunpack.c.l.b16 %v251
    %v569 = vunpack.c.h.b16 %v251
    %v570 = vunpack.c.l.b16 %v252
    %v571 = vunpack.c.l.b16 %v253
    %v572 = vunpack.c.h.b16 %v253
    %v573 = vunpack.c.l.b16 %v254
    %v574 = vunpack.c.l.b16 %v255
    %v575 = vunpack.c.h.b16 %v255
    %v576 = vunpack.c.l.b16 %v256
    %v577 = vunpack.c.l.b16 %v257
    %v578 = vunpack.c.h.b16 %v257
    %v579 = vunpack.c.l.b16 %v258
    %v580 = vunpack.c.l.b16 %v259
    %v581 = vunpack.c.h.b16 %v259
    %v582 = vunpack.c.l.b16 %v260
    %v583 = vunpack.c.l.b16 %v261
    %v584 = vunpack.c.h.b16 %v261
    %v585 = vunpack.c.l.b16 %v262
    %v586 = vunpack.c.l.b16 %v263
    %v587 = vunpack.c.h.b16 %v263
    %v588 = vunpack.c.l.b16 %v264
    %v589 = vunpack.c.l.b16 %v265
    %v590 = vunpack.c.h.b16 %v265
    %v591 = vunpack.c.l.b16 %v266
    %v592 = vunpack.c.l.b16 %v267
    %v593 = vunpack.c.h.b16 %v267
    %v594 = vunpack.c.l.b16 %v268
    %v595 = vunpack.c.l.b16 %v269
    %v596 = vunpack.c.h.b16 %v269
    %v597 = vunpack.c.l.b16 %v270
    %v598 = vunpack.c.l.b16 %v271
    %v599 = vunpack.c.h.b16 %v271
    %v600 = vunpack.c.l.b16 %v272
    %v601 = vunpack.c.l.b16 %v273
    %v602 = vunpack.c.h.b16 %v273
    %v603 = vunpack.c.l.b16 %v274
    %v604 = vunpack.c.l.b16 %v275
    %v605 = vunpack.c.h.b16 %v275
    %v606 = vunpack.c.l.b16 %v276
    %v607 = vunpack.c.l.b16 %v277
    %v608 = vunpack.c.h.b16 %v277
    %v609 = vunpack.c.l.b16 %v278
    %v610 = vunpack.c.l.b16 %v279
    %v611 = vunpack.c.h.b16 %v279
    %v612 = vunpack.c.l.b16 %v280
    %v613 = vunpack.c.l.b16 %v281
    %v614 = vunpack.c.h.b16 %v281
    %v615 = vunpack.c.l.b16 %v282
    %v616 = vunpack.c.l.b16 %v283
    %v617 = vunpack.c.h.b16 %v283
    %v618 = vunpack.c.l.b16 %v284
    %v619 = vunpack.c.l.b16 %v285
    %v620 = vunpack.c.h.b16 %v285
    %v621 = vunpack.c.l.b16 %v286
    %v622 = vunpack.c.l.b16 %v287
    %v623 = vunpack.c.h.b16 %v287
    %v624 = vunpack.c.l.b16 %v288
    %v625 = vunpack.c.l.b16 %v289
    %v626 = vunpack.c.h.b16 %v289
    %v627 = vunpack.c.l.b16 %v290
    %v628 = vunpack.c.l.b16 %v291
    %v629 = vunpack.c.h.b16 %v291
    %v630 = vunpack.c.l.b16 %v292
    %v631 = vunpack.c.l.b16 %v293
    %v632 = vunpack.c.h.b16 %v293
    %v633 = vunpack.c.l.b16 %v294
    %v634 = vunpack.c.l.b16 %v295
    %v635 = vunpack.c.h.b16 %v295
    %v636 = vunpack.c.l.b16 %v296
    %v637 = vunpack.c.l.b16 %v297
    %v638 = vunpack.c.h.b16 %v297
    %v639 = vunpack.c.l.b16 %v298
    %v640 = vunpack.c.l.b16 %v299
    %v641 = vunpack.c.h.b16 %v299
    %v642 = vunpack.c.l.b16 %v300
    %v643 = vunpack.c.l.b16 %v301
    %v644 = vunpack.c.h.b16 %v301
    %v645 = vunpack.c.l.b16 %v302
    %v646 = vunpack.c.l.b16 %v303
    %v647 = vunpack.c.h.b16 %v303
    %v648 = vunpack.c.l.b16 %v304
    %v649 = vunpack.c.l.b16 %v305
    %v650 = vunpack.c.h.b16 %v305
    %v651 = vunpack.c.l.b16 %v306
    %v652 = vunpack.c.l.b16 %v307
    %v653 = vunpack.c.h.b16 %v307
    %v654 = vunpack.c.l.b16 %v308
    %v655 = vunpack.c.l.b16 %v309
    %v656 = vunpack.c.h.b16 %v309
    %v657 = vunpack.c.l.b16 %v310
    %v658 = vunpack.c.l.b16 %v311
    %v659 = vunpack.c.h.b16 %v311
    %v660 = vunpack.c.l.b16 %v312
    %v661 = vunpack.c.l.b16 %v313
    %v662 = vunpack.c.h.b16 %v313
    %v663 = vunpack.c.l.b16 %v314
    %v664 = vunpack.c.l.b16 %v315
    %v665 = vunpack.c.h.b16 %v315
    %v666 = vunpack.c.l.b16 %v316
    %v667 = vunpack.c.l.b16 %v317
    %v668 = vunpack.c.h.b16 %v317
    %v669 = vunpack.c.l.b16 %v318
    %v670 = vunpack.c.l.b16 %v319
    %v671 = vunpack.c.h.b16 %v319
    %v672 = vunpack.c.l.b16 %v320
    %v673 = vunpack.c.l.b16 %v321
    %v674 = vunpack.c.h.b16 %v321
    %v675 = vunpack.c.l.b16 %v322
    %v676 = vunpack.c.l.b16 %v323
    %v677 = vunpack.c.h.b16 %v323
    %v678 = vunpack.c.l.b16 %v324
    %v679 = vunpack.c.l.b16 %v325
    %v680 = vunpack.c.h.b16 %v325
    %v681 = vunpack.c.l.b16 %v326
    %v682 = vunpack.c.l.b16 %v327
    %v683 = vunpack.c.h.b16 %v327
    %v684 = vunpack.c.l.b16 %v328
    %v685 = vunpack.c.l.b16 %v329
    %v686 = vunpack.c.h.b16 %v329
    %v687 = vunpack.c.l.b16 %v330
    %v688 = vunpack.c.l.b16 %v331
    %v689 = vunpack.c.h.b16 %v331
    %v690 = vunpack.c.l.b16 %v332
    %v691 = vunpack.c.l.b16 %v333
    %v692 = vunpack.c.h.b16 %v333
    %v693 = vunpack.c.l.b16 %v334
    %v694 = vunpack.c.l.b16 %v335
    %v695 = vunpack.c.h.b16 %v335
    %v696 = vunpack.c.l.b16 %v336
    %v697 = vunpack.c.l.b16 %v337
    %v698 = vunpack.c.h.b16 %v337
    %v699 = vunpack.c.l.b16 %v338
    %v700 = vunpack.c.l.b16 %v339
    %v701 = vunpack.c.h.b16 %v339
    %v702 = vunpack.c.l.b16 %v340
    %v703 = vunpack.c.l.b16 %v341
    %v704 = vunpack.c.h.b16 %v341
    %v705 = vunpack.c.l.b16 %v342
    %v706 = vunpack.c.l.b16 %v343
    %v707 = vunpack.c.h.b16 %v343
    %v708 = vunpack.c.l.b16 %v344
    %v709 = vunpack.c.l.b16 %v345
    %v710 = vunpack.c.h.b16 %v345
    %v711 = vunpack.c.l.b16 %v346
    %v712 = vunpack.c.l.b16 %v347
    %v713 = vunpack.c.h.b16 %v347
    %v714 = vunpack.c.l.b16 %v348
    %v715 = vunpack.c.l.b16 %v349
    %v716 = vunpack.c.h.b16 %v349
    %v717 = vunpack.c.l.b16 %v350
    %v718 = vunpack.c.l.b16 %v351
    %v719 = vunpack.c.h.b16 %v351
    %v720 = vunpack.c.l.b16 %v352
    %v721 = vunpack.c.l.b16 %v353
    %v722 = vunpack.c.h.b16 %v353
    %v723 = vunpack.c.l.b16 %v354
    %v724 = vunpack.c.l.b16 %v355
    %v725 = vunpack.c.h.b16 %v355
    %v726 = vunpack.c.l.b16 %v356
    %v727 = vunpack.c.l.b16 %v357
    %v728 = vunpack.c.h.b16 %v357
    %v729 = vunpack.c.l.b16 %v358
    %v730 = vunpack.c.l.b16 %v359
    %v731 = vunpack.c.h.b16 %v359
    %v732 = vunpack.c.l.b16 %v360
    %v733 = vunpack.c.l.b16 %v361
    %v734 = vunpack.c.h.b16 %v361
    %v735 = vunpack.c.l.b16 %v362
    %v736 = vunpack.c.l.b16 %v363
    %v737 = vunpack.c.h.b16 %v363
    %v738 = vunpack.c.l.b16 %v364
    %v739 = vunpack.c.l.b16 %v365
    %v740 = vunpack.c.h.b16 %v365
    %v741 = vunpack.c.l.b16 %v366
    %v742 = vunpack.c.l.b16 %v367
    %v743 = vunpack.c.h.b16 %v367
    %v744 = vunpack.c.l.b16 %v368
    %v745 = vpack.c.b16 %v556, %v553
    %v746 = vpack.c.b16 %v557, %v554
    %v747 = vpack.c.b16 %v558, %v555
    %v748 = vpack.c.b16 %v562, %v559
    %v749 = vpack.c.b16 %v563, %v560
    %v750 = vpack.c.b16 %v564, %v561
    %v751 = vpack.c.b16 %v568, %v565
    %v752 = vpack.c.b16 %v569, %v566
    %v753 = vpack.c.b16 %v570, %v567
    %v754 = vpack.c.b16 %v574, %v571
    %v755 = vpack.c.b16 %v575, %v572
    %v756 = vpack.c.b16 %v576, %v573
    %v757 = vpack.c.b16 %v580, %v577
    %v758 = vpack.c.b16 %v581, %v578
    %v759 = vpack.c.b16 %v582, %v579
    %v760 = vpack.c.b16 %v586, %v583
    %v761 = vpack.c.b16 %v587, %v584
    %v762 = vpack.c.b16 %v588, %v585
    %v763 = vpack.c.b16 %v592, %v589
    %v764 = vpack.c.b16 %v593, %v590
    %v765 = vpack.c.b16 %v594, %v591
    %v766 = vpack.c.b16 %v598, %v595
    %v767 = vpack.c.b16 %v599, %v596
    %v768 = vpack.c.b16 %v600, %v597
    %v769 = vpack.c.b16 %v604, %v601
    %v770 = vpack.c.b16 %v605, %v602
    %v771 = vpack.c.b16 %v606, %v603
    %v772 = vpack.c.b16 %v610, %v607
    %v773 = vpack.c.b16 %v611, %v608
    %v774 = vpack.c.b16 %v612, %v609
    %v775 = vpack.c.b16 %v616, %v613
    %v776 = vpack.c.b16 %v617, %v614
    %v777 = vpack.c.b16 %v618, %v615
    %v778 = vpack.c.b16 %v622, %v619
    %v779 = vpack.c.b16 %v623, %v620
    %v780 = vpack.c.b16 %v624, %v621
    %v781 = vpack.c.b16 %v628, %v625
    %v782 = vpack.c.b16 %v629, %v626
    %v783 = vpack.c.b16 %v630, %v627
    %v784 = vpack.c.b16 %v634, %v631
    %v785 = vpack.c.b16 %v635, %v632
    %v786 = vpack.c.b16 %v636, %v633
    %v787 = vpack.c.b16 %v640, %v637
    %v788 = vpack.c.b16 %v641, %v638
    %v789 = vpack.c.b16 %v642, %v639
    %v790 = vpack.c.b16 %v646, %v643
    %v791 = vpack.c.b16 %v647, %v644
    %v792 = vpack.c.b16 %v648, %v645
    %v793 = vpack.c.b16 %v652, %v649
    %v794 = vpack.c.b16 %v653, %v650
    %v795 = vpack.c.b16 %v654, %v651
    %v796 = vpack.c.b16 %v658, %v655
    %v797 = vpack.c.b16 %v659, %v656
    %v798 = vpack.c.b16 %v660, %v657
    %v799 = vpack.c.b16 %v664, %v661
    %v800 = vpack.c.b16 %v665, %v662
    %v801 = vpack.c.b16 %v666, %v663
    %v802 = vpack.c.b16 %v670, %v667
    %v803 = vpack.c.b16 %v671, %v668
    %v804 = vpack.c.b16 %v672, %v669
    %v805 = vpack.c.b16 %v676, %v673
    %v806 = vpack.c.b16 %v677, %v674
    %v807 = vpack.c.b16 %v678, %v675
    %v808 = vpack.c.b16 %v682, %v679
    %v809 = vpack.c.b16 %v683, %v680
    %v810 = vpack.c.b16 %v684, %v681
    %v811 = vpack.c.b16 %v688, %v685
    %v812 = vpack.c.b16 %v689, %v686
    %v813 = vpack.c.b16 %v690, %v687
    %v814 = vpack.c.b16 %v694, %v691
    %v815 = vpack.c.b16 %v695, %v692
    %v816 = vpack.c.b16 %v696, %v693
    %v817 = vpack.c.b16 %v700, %v697
    %v818 = vpack.c.b16 %v701, %v698
    %v819 = vpack.c.b16 %v702, %v699
    %v820 = vpack.c.b16 %v706, %v703
    %v821 = vpack.c.b16 %v707, %v704
    %v822 = vpack.c.b16 %v708, %v705
    %v823 = vpack.c.b16 %v712, %v709
    %v824 = vpack.c.b16 %v713, %v710
    %v825 = vpack.c.b16 %v714, %v711
    %v826 = vpack.c.b16 %v718, %v715
    %v827 = vpack.c.b16 %v719, %v716
    %v828 = vpack.c.b16 %v720, %v717
    %v829 = vpack.c.b16 %v724, %v721
    %v830 = vpack.c.b16 %v725, %v722
    %v831 = vpack.c.b16 %v726, %v723
    %v832 = vpack.c.b16 %v730, %v727
    %v833 = vpack.c.b16 %v731, %v728
    %v834 = vpack.c.b16 %v732, %v729
    %v835 = vpack.c.b16 %v736, %v733
    %v836 = vpack.c.b16 %v737, %v734
    %v837 = vpack.c.b16 %v738, %v735
    %v838 = vpack.c.b16 %v742, %v739
    %v839 = vpack.c.b16 %v743, %v740
    %v840 = vpack.c.b16 %v744, %v741
    %937 = vmatpush.bf16.msra.mxu0 %v766
    %938 = vmatpush.bf16.msra.mxu0 %v763
    %939 = vmatpush.bf16.msra.mxu0 %v760
    %940 = vmatpush.bf16.msra.mxu0 %v757
    %941 = vmatpush.bf16.msra.mxu0 %v754
    %942 = vmatpush.bf16.msra.mxu0 %v751
    %943 = vmatpush.bf16.msra.mxu0 %v748
    %944 = vmatpush.bf16.msra.mxu0 %v745
    %945 = vmatmul.bf16.gmra.mxu0 %v237
    %v946 = vpop.f32.mrf.mxu0
    %v947 = vadd.f32 %v396, %v946
    %v948 = vpop.f32.mrf.mxu0
    %949 = vdwg.mxu0
    %950 = vmatpush.bf16.msra.mxu0 %v790
    %951 = vmatpush.bf16.msra.mxu0 %v787
    %952 = vmatpush.bf16.msra.mxu0 %v784
    %953 = vmatpush.bf16.msra.mxu0 %v781
    %954 = vmatpush.bf16.msra.mxu0 %v778
    %955 = vmatpush.bf16.msra.mxu0 %v775
    %956 = vmatpush.bf16.msra.mxu0 %v772
    %957 = vmatpush.bf16.msra.mxu0 %v769
    %958 = vmatmul.bf16.gmra.mxu0 %v238
    %v959 = vpop.f32.mrf.mxu0
    %v960 = vadd.f32 %v947, %v959
    %v961 = vpop.f32.mrf.mxu0
    %962 = vdwg.mxu0
    %963 = vmatpush.bf16.msra.mxu0 %v814
    %964 = vmatpush.bf16.msra.mxu0 %v811
    %965 = vmatpush.bf16.msra.mxu0 %v808
    %966 = vmatpush.bf16.msra.mxu0 %v805
    %967 = vmatpush.bf16.msra.mxu0 %v802
    %968 = vmatpush.bf16.msra.mxu0 %v799
    %969 = vmatpush.bf16.msra.mxu0 %v796
    %970 = vmatpush.bf16.msra.mxu0 %v793
    %971 = vmatmul.bf16.gmra.mxu0 %v239
    %v972 = vpop.f32.mrf.mxu0
    %v973 = vadd.f32 %v960, %v972
    %v974 = vpop.f32.mrf.mxu0
    %975 = vdwg.mxu0
    %976 = vmatpush.bf16.msra.mxu0 %v838
    %977 = vmatpush.bf16.msra.mxu0 %v835
    %978 = vmatpush.bf16.msra.mxu0 %v832
    %979 = vmatpush.bf16.msra.mxu0 %v829
    %980 = vmatpush.bf16.msra.mxu0 %v826
    %981 = vmatpush.bf16.msra.mxu0 %v823
    %982 = vmatpush.bf16.msra.mxu0 %v820
    %983 = vmatpush.bf16.msra.mxu0 %v817
    %984 = vmatmul.bf16.gmra.mxu0 %v240
    %v985 = vpop.f32.mrf.mxu0
    %v986 = vadd.f32 %v973, %v985
    %v987 = vpop.f32.mrf.mxu0
    %988 = vdwg.mxu0
    %989 = vmatpush.bf16.msra.mxu0 %v767
    %990 = vmatpush.bf16.msra.mxu0 %v764
    %991 = vmatpush.bf16.msra.mxu0 %v761
    %992 = vmatpush.bf16.msra.mxu0 %v758
    %993 = vmatpush.bf16.msra.mxu0 %v755
    %994 = vmatpush.bf16.msra.mxu0 %v752
    %995 = vmatpush.bf16.msra.mxu0 %v749
    %996 = vmatpush.bf16.msra.mxu0 %v746
    %997 = vmatmul.bf16.gmra.mxu0 %v237
    %v998 = vpop.f32.mrf.mxu0
    %v999 = vadd.f32 %v409, %v998
    %v1000 = vpop.f32.mrf.mxu0
    %1001 = vdwg.mxu0
    %1002 = vmatpush.bf16.msra.mxu0 %v791
    %1003 = vmatpush.bf16.msra.mxu0 %v788
    %1004 = vmatpush.bf16.msra.mxu0 %v785
    %1005 = vmatpush.bf16.msra.mxu0 %v782
    %1006 = vmatpush.bf16.msra.mxu0 %v779
    %1007 = vmatpush.bf16.msra.mxu0 %v776
    %1008 = vmatpush.bf16.msra.mxu0 %v773
    %1009 = vmatpush.bf16.msra.mxu0 %v770
    %1010 = vmatmul.bf16.gmra.mxu0 %v238
    %v1011 = vpop.f32.mrf.mxu0
    %v1012 = vadd.f32 %v999, %v1011
    %v1013 = vpop.f32.mrf.mxu0
    %1014 = vdwg.mxu0
    %1015 = vmatpush.bf16.msra.mxu0 %v815
    %1016 = vmatpush.bf16.msra.mxu0 %v812
    %1017 = vmatpush.bf16.msra.mxu0 %v809
    %1018 = vmatpush.bf16.msra.mxu0 %v806
    %1019 = vmatpush.bf16.msra.mxu0 %v803
    %1020 = vmatpush.bf16.msra.mxu0 %v800
    %1021 = vmatpush.bf16.msra.mxu0 %v797
    %1022 = vmatpush.bf16.msra.mxu0 %v794
    %1023 = vmatmul.bf16.gmra.mxu0 %v239
    %v1024 = vpop.f32.mrf.mxu0
    %v1025 = vadd.f32 %v1012, %v1024
    %v1026 = vpop.f32.mrf.mxu0
    %1027 = vdwg.mxu0
    %1028 = vmatpush.bf16.msra.mxu0 %v839
    %1029 = vmatpush.bf16.msra.mxu0 %v836
    %1030 = vmatpush.bf16.msra.mxu0 %v833
    %1031 = vmatpush.bf16.msra.mxu0 %v830
    %1032 = vmatpush.bf16.msra.mxu0 %v827
    %1033 = vmatpush.bf16.msra.mxu0 %v824
    %1034 = vmatpush.bf16.msra.mxu0 %v821
    %1035 = vmatpush.bf16.msra.mxu0 %v818
    %1036 = vmatmul.bf16.gmra.mxu0 %v240
    %v1037 = vpop.f32.mrf.mxu0
    %v1038 = vadd.f32 %v1025, %v1037
    %v1039 = vpop.f32.mrf.mxu0
    %1040 = vdwg.mxu0
    %1041 = vmatpush.bf16.msra.mxu0 %v768
    %1042 = vmatpush.bf16.msra.mxu0 %v765
    %1043 = vmatpush.bf16.msra.mxu0 %v762
    %1044 = vmatpush.bf16.msra.mxu0 %v759
    %1045 = vmatpush.bf16.msra.mxu0 %v756
    %1046 = vmatpush.bf16.msra.mxu0 %v753
    %1047 = vmatpush.bf16.msra.mxu0 %v750
    %1048 = vmatpush.bf16.msra.mxu0 %v747
    %1049 = vmatmul.bf16.gmra.mxu0 %v237
    %v1050 = vpop.f32.mrf.mxu0
    %v1051 = vadd.f32 %v422, %v1050
    %v1052 = vpop.f32.mrf.mxu0
    %1053 = vdwg.mxu0
    %1054 = vmatpush.bf16.msra.mxu0 %v792
    %1055 = vmatpush.bf16.msra.mxu0 %v789
    %1056 = vmatpush.bf16.msra.mxu0 %v786
    %1057 = vmatpush.bf16.msra.mxu0 %v783
    %1058 = vmatpush.bf16.msra.mxu0 %v780
    %1059 = vmatpush.bf16.msra.mxu0 %v777
    %1060 = vmatpush.bf16.msra.mxu0 %v774
    %1061 = vmatpush.bf16.msra.mxu0 %v771
    %1062 = vmatmul.bf16.gmra.mxu0 %v238
    %v1063 = vpop.f32.mrf.mxu0
    %v1064 = vadd.f32 %v1051, %v1063
    %v1065 = vpop.f32.mrf.mxu0
    %1066 = vdwg.mxu0
    %1067 = vmatpush.bf16.msra.mxu0 %v816
    %1068 = vmatpush.bf16.msra.mxu0 %v813
    %1069 = vmatpush.bf16.msra.mxu0 %v810
    %1070 = vmatpush.bf16.msra.mxu0 %v807
    %1071 = vmatpush.bf16.msra.mxu0 %v804
    %1072 = vmatpush.bf16.msra.mxu0 %v801
    %1073 = vmatpush.bf16.msra.mxu0 %v798
    %1074 = vmatpush.bf16.msra.mxu0 %v795
    %1075 = vmatmul.bf16.gmra.mxu0 %v239
    %v1076 = vpop.f32.mrf.mxu0
    %v1077 = vadd.f32 %v1064, %v1076
    %v1078 = vpop.f32.mrf.mxu0
    %1079 = vdwg.mxu0
    %1080 = vmatpush.bf16.msra.mxu0 %v840
    %1081 = vmatpush.bf16.msra.mxu0 %v837
    %1082 = vmatpush.bf16.msra.mxu0 %v834
    %1083 = vmatpush.bf16.msra.mxu0 %v831
    %1084 = vmatpush.bf16.msra.mxu0 %v828
    %1085 = vmatpush.bf16.msra.mxu0 %v825
    %1086 = vmatpush.bf16.msra.mxu0 %v822
    %1087 = vmatpush.bf16.msra.mxu0 %v819
    %1088 = vmatmul.bf16.gmra.mxu0 %v240
    %v1089 = vpop.f32.mrf.mxu0
    %v1090 = vadd.f32 %v1077, %v1089
    %v1091 = vpop.f32.mrf.mxu0
    %1092 = vdwg.mxu0
    %v1093 = vld [vmem:[%s6] sm:$0x7]
    %v1095 = vperm.slane %v1093, 0
    %v1096 = vperm.slane %v1093, 1
    %v1097 = vperm.slane %v1093, 2
    %v1101 = vadd.f32 %v986, %v1095
    %v1102 = vadd.f32 %v1038, %v1096
    %v1103 = vadd.f32 %v1090, %v1097
    %v1104 = vmax.f32 %v1101, 0.0
    %v1105 = vmax.f32 %v1102, 0.0
    %v1106 = vmax.f32 %v1103, 0.0
    %v1107 = vpack.c.bf16 %v1104, %v1104
    %v1108 = vpack.c.bf16 %v1105, %v1105
    %v1109 = vpack.c.bf16 %v1106, %v1106
    %v1110 = vld [vmem:[#allocation13] sm:$0xf]
    %v1111 = vld [vmem:[#allocation13 + $0x4] sm:$0xf]
    %v1112 = vld [vmem:[#allocation13 + $0x8] sm:$0xf]
    %v1113 = vld [vmem:[#allocation13 + $0xc] sm:$0xf]
    %v1114 = vld [vmem:[#allocation13 + $0x10] sm:$0xf]
    %v1115 = vld [vmem:[#allocation13 + $0x14] sm:$0xf]
    %v1116 = vld [vmem:[#allocation13 + $0x18] sm:$0xf]
    %v1117 = vld [vmem:[#allocation13 + $0x1c] sm:$0xf]
    %v1118 = vld [vmem:[#allocation13 + $0x20] sm:$0xf]
    %v1119 = vld [vmem:[#allocation13 + $0x24] sm:$0xf]
    %v1120 = vld [vmem:[#allocation13 + $0x28] sm:$0xf]
    %v1121 = vld [vmem:[#allocation13 + $0x2c] sm:$0xf]
    %v1122 = vld [vmem:[#allocation13 + $0x30] sm:$0xf]
    %v1123 = vld [vmem:[#allocation13 + $0x34] sm:$0xf]
    %v1124 = vld [vmem:[#allocation13 + $0x38] sm:$0xf]
    %v1125 = vld [vmem:[#allocation13 + $0x3c] sm:$0xf]
    %v1126 = vld [vmem:[#allocation13 + $0x40] sm:$0xf]
    %v1127 = vld [vmem:[#allocation13 + $0x44] sm:$0xf]
    %v1128 = vld [vmem:[#allocation13 + $0x48] sm:$0xf]
    %v1129 = vld [vmem:[#allocation13 + $0x4c] sm:$0xf]
    %v1130 = vld [vmem:[#allocation13 + $0x50] sm:$0xf]
    %v1131 = vld [vmem:[#allocation13 + $0x54] sm:$0xf]
    %v1132 = vld [vmem:[#allocation13 + $0x58] sm:$0xf]
    %v1133 = vld [vmem:[#allocation13 + $0x5c] sm:$0xf]
    %v1134 = vld [vmem:[#allocation13 + $0x60] sm:$0xf]
    %v1135 = vld [vmem:[#allocation13 + $0x64] sm:$0xf]
    %v1136 = vld [vmem:[#allocation13 + $0x68] sm:$0xf]
    %v1137 = vld [vmem:[#allocation13 + $0x6c] sm:$0xf]
    %v1138 = vld [vmem:[#allocation13 + $0x70] sm:$0xf]
    %v1139 = vld [vmem:[#allocation13 + $0x74] sm:$0xf]
    %v1140 = vld [vmem:[#allocation13 + $0x78] sm:$0xf]
    %v1141 = vld [vmem:[#allocation13 + $0x7c] sm:$0xf]
    %v1142 = vld [vmem:[#allocation13 + $0x80] sm:$0xf]
    %v1143 = vld [vmem:[#allocation13 + $0x84] sm:$0xf]
    %v1144 = vld [vmem:[#allocation13 + $0x88] sm:$0xf]
    %v1145 = vld [vmem:[#allocation13 + $0x8c] sm:$0xf]
    %v1146 = vld [vmem:[#allocation13 + $0x90] sm:$0xf]
    %v1147 = vld [vmem:[#allocation13 + $0x94] sm:$0xf]
    %v1148 = vld [vmem:[#allocation13 + $0x98] sm:$0xf]
    %v1149 = vld [vmem:[#allocation13 + $0x9c] sm:$0xf]
    %v1150 = vld [vmem:[#allocation13 + $0xa0] sm:$0xf]
    %v1151 = vld [vmem:[#allocation13 + $0xa4] sm:$0xf]
    %v1152 = vld [vmem:[#allocation13 + $0xa8] sm:$0xf]
    %v1153 = vld [vmem:[#allocation13 + $0xac] sm:$0xf]
    %v1154 = vld [vmem:[#allocation13 + $0xb0] sm:$0xf]
    %v1155 = vld [vmem:[#allocation13 + $0xb4] sm:$0xf]
    %v1156 = vld [vmem:[#allocation13 + $0xb8] sm:$0xf]
    %v1157 = vld [vmem:[#allocation13 + $0xbc] sm:$0xf]
    %v1158 = vld [vmem:[%s8] sm:$0x1]
    %v1160 = vperm.slane %v1158, 0
    %v1210 = vunpack.c.l.b16 %v1110
    %v1211 = vunpack.c.l.b16 %v1111
    %v1212 = vunpack.c.l.b16 %v1112
    %v1213 = vunpack.c.l.b16 %v1113
    %v1214 = vunpack.c.l.b16 %v1114
    %v1215 = vunpack.c.l.b16 %v1115
    %v1216 = vunpack.c.l.b16 %v1116
    %v1217 = vunpack.c.l.b16 %v1117
    %v1218 = vunpack.c.l.b16 %v1118
    %v1219 = vunpack.c.l.b16 %v1119
    %v1220 = vunpack.c.l.b16 %v1120
    %v1221 = vunpack.c.l.b16 %v1121
    %v1222 = vunpack.c.l.b16 %v1122
    %v1223 = vunpack.c.l.b16 %v1123
    %v1224 = vunpack.c.l.b16 %v1124
    %v1225 = vunpack.c.l.b16 %v1125
    %v1226 = vunpack.c.l.b16 %v1126
    %v1227 = vunpack.c.l.b16 %v1127
    %v1228 = vunpack.c.l.b16 %v1128
    %v1229 = vunpack.c.l.b16 %v1129
    %v1230 = vunpack.c.l.b16 %v1130
    %v1231 = vunpack.c.l.b16 %v1131
    %v1232 = vunpack.c.l.b16 %v1132
    %v1233 = vunpack.c.l.b16 %v1133
    %v1234 = vunpack.c.l.b16 %v1134
    %v1235 = vunpack.c.l.b16 %v1135
    %v1236 = vunpack.c.l.b16 %v1136
    %v1237 = vunpack.c.l.b16 %v1137
    %v1238 = vunpack.c.l.b16 %v1138
    %v1239 = vunpack.c.l.b16 %v1139
    %v1240 = vunpack.c.l.b16 %v1140
    %v1241 = vunpack.c.l.b16 %v1141
    %v1242 = vunpack.c.l.b16 %v1142
    %v1243 = vunpack.c.l.b16 %v1143
    %v1244 = vunpack.c.l.b16 %v1144
    %v1245 = vunpack.c.l.b16 %v1145
    %v1246 = vunpack.c.l.b16 %v1146
    %v1247 = vunpack.c.l.b16 %v1147
    %v1248 = vunpack.c.l.b16 %v1148
    %v1249 = vunpack.c.l.b16 %v1149
    %v1250 = vunpack.c.l.b16 %v1150
    %v1251 = vunpack.c.l.b16 %v1151
    %v1252 = vunpack.c.l.b16 %v1152
    %v1253 = vunpack.c.l.b16 %v1153
    %v1254 = vunpack.c.l.b16 %v1154
    %v1255 = vunpack.c.l.b16 %v1155
    %v1256 = vunpack.c.l.b16 %v1156
    %v1257 = vunpack.c.l.b16 %v1157
    %v1258 = vpack.c.b16 %v1211, %v1210
    %v1259 = vpack.c.b16 %v1213, %v1212
    %v1260 = vpack.c.b16 %v1215, %v1214
    %v1261 = vpack.c.b16 %v1217, %v1216
    %v1262 = vpack.c.b16 %v1219, %v1218
    %v1263 = vpack.c.b16 %v1221, %v1220
    %v1264 = vpack.c.b16 %v1223, %v1222
    %v1265 = vpack.c.b16 %v1225, %v1224
    %v1266 = vpack.c.b16 %v1227, %v1226
    %v1267 = vpack.c.b16 %v1229, %v1228
    %v1268 = vpack.c.b16 %v1231, %v1230
    %v1269 = vpack.c.b16 %v1233, %v1232
    %v1270 = vpack.c.b16 %v1235, %v1234
    %v1271 = vpack.c.b16 %v1237, %v1236
    %v1272 = vpack.c.b16 %v1239, %v1238
    %v1273 = vpack.c.b16 %v1241, %v1240
    %v1274 = vpack.c.b16 %v1243, %v1242
    %v1275 = vpack.c.b16 %v1245, %v1244
    %v1276 = vpack.c.b16 %v1247, %v1246
    %v1277 = vpack.c.b16 %v1249, %v1248
    %v1278 = vpack.c.b16 %v1251, %v1250
    %v1279 = vpack.c.b16 %v1253, %v1252
    %v1280 = vpack.c.b16 %v1255, %v1254
    %v1281 = vpack.c.b16 %v1257, %v1256
    %1306 = vmatpush.bf16.msra.mxu0 %v1265
    %1307 = vmatpush.bf16.msra.mxu0 %v1264
    %1308 = vmatpush.bf16.msra.mxu0 %v1263
    %1309 = vmatpush.bf16.msra.mxu0 %v1262
    %1310 = vmatpush.bf16.msra.mxu0 %v1261
    %1311 = vmatpush.bf16.msra.mxu0 %v1260
    %1312 = vmatpush.bf16.msra.mxu0 %v1259
    %1313 = vmatpush.bf16.msra.mxu0 %v1258
    %1314 = vmatmul.bf16.gmra.mxu0 %v1107
    %v1315 = vpop.f32.mrf.mxu0
    %v1316 = vadd.f32 %v1160, %v1315
    %v1317 = vpop.f32.mrf.mxu0
    %1318 = vdwg.mxu0
    %1319 = vmatpush.bf16.msra.mxu0 %v1273
    %1320 = vmatpush.bf16.msra.mxu0 %v1272
    %1321 = vmatpush.bf16.msra.mxu0 %v1271
    %1322 = vmatpush.bf16.msra.mxu0 %v1270
    %1323 = vmatpush.bf16.msra.mxu0 %v1269
    %1324 = vmatpush.bf16.msra.mxu0 %v1268
    %1325 = vmatpush.bf16.msra.mxu0 %v1267
    %1326 = vmatpush.bf16.msra.mxu0 %v1266
    %1327 = vmatmul.bf16.gmra.mxu0 %v1108
    %v1328 = vpop.f32.mrf.mxu0
    %v1329 = vadd.f32 %v1316, %v1328
    %v1330 = vpop.f32.mrf.mxu0
    %1331 = vdwg.mxu0
    %1332 = vmatpush.bf16.msra.mxu0 %v1281
    %1333 = vmatpush.bf16.msra.mxu0 %v1280
    %1334 = vmatpush.bf16.msra.mxu0 %v1279
    %1335 = vmatpush.bf16.msra.mxu0 %v1278
    %1336 = vmatpush.bf16.msra.mxu0 %v1277
    %1337 = vmatpush.bf16.msra.mxu0 %v1276
    %1338 = vmatpush.bf16.msra.mxu0 %v1275
    %1339 = vmatpush.bf16.msra.mxu0 %v1274
    %1340 = vmatmul.bf16.gmra.mxu0 %v1109
    %v1341 = vpop.f32.mrf.mxu0
    %v1342 = vadd.f32 %v1329, %v1341
    %v1343 = vpop.f32.mrf.mxu0
    %1344 = vdwg.mxu0
    %vm1345 = vcmask 410624
    %1346 = vst.msk [vmem:[#allocation14] sm:$0x3] %vm1345, %v1342
    %v1347 = vsel %vm379, %v1342, -inf
    %1348 = vmax.xlane.f32.xlu0 %v1347
    %v1349 = vpop.xlane.xlu0 %1348
    %v1350 = vsub.f32 %v1342, %v1349
    %v1351 = vmul.f32 %v1350, 1.442695
    %v1352 = vpow.pop %v1351
    %v1353 = vld [vmem:[%s9] sm:$0x1]
    %v1355 = vperm.slane %v1353, 0
    %v1357 = vmul.f32 %v1352, %v1355
    %v1358 = vsel %vm379, %v1357, 0.0
    %1359 = vadd.xlane.f32.xlu0 %v1358
    %v1360 = vpop.xlane.xlu0 %1359
    %v1361 = vsel %vm379, %v1352, 0.0
    %1362 = vadd.xlane.f32.xlu0 %v1361
    %v1363 = vpop.xlane.xlu0 %1362
    %v1364 = vrcp.pop %v1363
    %v1365 = vmul.f32 %v1360, %v1364
    %vm1366 = vcmask 1024
    %1367 = vst.msk [vmem:[%s11] sm:$0x3] %vm1366, %v1365
    // Predicated region
    $region70: #{tpu_custom_call.1} parent=1 // pred_check
      _
    $region71: #{tpu_custom_call.1} parent=1 // pred_check_branch
      %1369 = sbr.rel (0) target = $region73
    $region72: #{tpu_custom_call.1} parent=1 // pred_region
      %1371 = vsyncadd [#allocation4], 0
      %s1373 = sshll.u32 [#allocation14], 4
      %s1374 = int_to_ptr.vmem [resolvable:$true] %s1373
      %s1375 = sshll.u32 %s10, 4
      %s1376 = int_to_ptr.hbm [resolvable:$true] %s1375
      %1378 = dma.vmem_to_hbm [thread:$0]  %s1374, 32, %s1376, [#allocation4]
    $region73: #{tpu_custom_call.1} parent=1 // pred_fallthru
      _
    // Predicated region
    $region74: #{tpu_custom_call.1} parent=1 // pred_check
      _
    $region75: #{tpu_custom_call.1} parent=1 // pred_check_branch
      %1380 = sbr.rel (0) target = $region77
    $region76: #{tpu_custom_call.1} parent=1 // pred_region
      _
    $region77: #{tpu_custom_call.1} parent=1 // pred_fallthru
      _
    // Predicated region
    $region78: #{tpu_custom_call.1} parent=1 // pred_check
      _
    $region79: #{tpu_custom_call.1} parent=1 // pred_check_branch
      %1382 = sbr.rel (0) target = $region81
    $region80: #{tpu_custom_call.1} parent=1 // pred_region
      %1384 = dma.done [#allocation4], 32
    $region81: #{tpu_custom_call.1} parent=1 // pred_fallthru
      _
    // Predicated region
    $region82: #{tpu_custom_call.1} parent=1 // pred_check
      _
    $region83: #{tpu_custom_call.1} parent=1 // pred_check_branch
      %1386 = sbr.rel (0) target = $region85
    $region84: #{tpu_custom_call.1} parent=1 // pred_region
      _
    $region85: #{tpu_custom_call.1} parent=1 // pred_fallthru
      _
    %1387 = vsyncpa [#allocation3], 1
    %1388 = vsyncpa [#allocation6], 1
    %1389 = vsyncpa [#allocation9], 1
    %1390 = vsyncpa [#allocation12], 1
    %1391 = vsyncpa [#allocation4], 1

</llo_original>
